<compile_context>
chip_gen: v7x
topology: tpu7x:2x2x1
jax: 0.10.0
libtpu: 0.0.40
codegen_flags: <defaults>
</compile_context>

<pallas_src>
import jax
import jax.numpy as jnp
from jax import lax
from jax.experimental import pallas as pl
from jax.experimental.pallas import tpu as pltpu


def _round_up(x, m):
    return (x + m - 1) // m * m


def maxpool_agg_kernel(src_ref, trg_ref,                 # VMEM int32 [e_chunk, 1]
                       x_ref, fcw_ref, fcb_ref,          # VMEM (compute dtype / f32)
                       wx_ref, wagg_ref,                 # VMEM weights (split W)
                       o_ref,                            # VMEM out [N_p, F_out_p]
                       xw_ref, agg_ref):                 # VMEM scratch [N_p, H_p] f32
    j = pl.program_id(0)                 # edge chunk ("arbitrary" reduction axis)

    e_chunk = src_ref.shape[0]           # static
    n_pad = agg_ref.shape[0]
    cdt = fcw_ref.dtype                  # MXU compute dtype for big matmuls

    # ---- init (first chunk only): zero accumulator, precompute xw = x @ fc_w --
    @pl.when(j == 0)
    def _init():
        agg_ref[...] = jnp.zeros_like(agg_ref)
        xw_ref[...] = jnp.dot(x_ref[...], fcw_ref[...],
                              preferred_element_type=jnp.float32)

    # ---- 1) Exact vectorized gather on the MXU: hid_pre = onehot(trg) @ xw ----
    trg = trg_ref[...]                                                # [e_chunk, 1] i32
    node_iota = lax.broadcasted_iota(jnp.int32, (e_chunk, n_pad), 1)
    onehot = (trg == node_iota).astype(jnp.float32)                   # [e_chunk, N_p]
    hid = jnp.dot(onehot, xw_ref[...],
                  preferred_element_type=jnp.float32)                 # [e_chunk, H_p]
    hid = jnp.maximum(hid + fcb_ref[...], 0.0)                        # bias + ReLU (VPU)

    # ---- 2) Vectorized segment-max of this edge chunk into the accumulator ---
    # For each node row: mask all edges whose src == node id, max-reduce over
    # the (sublane) edge axis.  All edges of the chunk are processed in
    # parallel; the only loop is the static unroll over node rows (N_p small).
    src = src_ref[...]                                                # [e_chunk, 1] i32
    for blk in range(n_pad // 8):                                     # static
        rows = []
        for r in range(8):                                            # static
            m = src == (blk * 8 + r)                                  # [e_chunk, 1] bool
            masked = jnp.where(m, hid, 0.0)                           # lane-broadcast
            rows.append(jnp.max(masked, axis=0, keepdims=True))       # [1, H_p]
        upd = jnp.concatenate(rows, axis=0)                           # [8, H_p]
        lo, hi = blk * 8, (blk + 1) * 8
        agg_ref[lo:hi, :] = jnp.maximum(agg_ref[lo:hi, :], upd)

    # ---- 3) Finalize on last edge chunk: out = x @ W_x + agg @ W_agg ---------
    @pl.when(j == pl.num_programs(0) - 1)
    def _finalize():
        out = jnp.dot(x_ref[...], wx_ref[...], preferred_element_type=jnp.float32)
        out = out + jnp.dot(agg_ref[...].astype(cdt), wagg_ref[...],
                            preferred_element_type=jnp.float32)
        o_ref[...] = out.astype(o_ref.dtype)


def maxpool_aggregator(x, edge_index, fc_w, fc_b, weights_matrix,
                       *, compute_dtype=jnp.float32, edge_chunk=512):
    """x: [N, F_in], edge_index: [2, E] int (src, trg), fc_w: [F_in, H],
    fc_b: [H], weights_matrix: [F_in + H, F_out].  Returns [N, F_out] f32."""
    N, F_in = x.shape
    E = edge_index.shape[1]
    H = fc_w.shape[1]
    F_out = weights_matrix.shape[1]
    assert weights_matrix.shape[0] == F_in + H

    # Lane-dense padding: last dims to multiples of 128, node/edge counts to
    # sublane multiples of 8.
    F_in_p = _round_up(F_in, 128)
    H_p = _round_up(H, 128)
    F_out_p = _round_up(F_out, 128)
    N_p = _round_up(N, 8)
    edge_chunk = min(edge_chunk, _round_up(E, 8))
    E_p = _round_up(E, edge_chunk)

    f32 = jnp.float32
    cdt = compute_dtype
    xf = x.astype(f32)
    wf = weights_matrix.astype(f32)

    xp = jnp.zeros((N_p, F_in_p), f32).at[:N, :F_in].set(xf).astype(cdt)
    fcw_p = jnp.zeros((F_in_p, H_p), f32).at[:F_in, :H].set(fc_w.astype(f32)).astype(cdt)
    fcb_p = jnp.zeros((1, H_p), f32).at[0, :H].set(fc_b.astype(f32))
    wx_p = jnp.zeros((F_in_p, F_out_p), f32).at[:F_in, :F_out].set(wf[:F_in]).astype(cdt)
    wagg_p = jnp.zeros((H_p, F_out_p), f32).at[:H, :F_out].set(wf[F_in:]).astype(cdt)

    # Padded edges get index -1: they match no node in the comparison-based
    # gather / segment-max, so they contribute nothing (no OOB addressing —
    # indices are only compared, never used as addresses).
    src_p = jnp.full((E_p, 1), -1, jnp.int32).at[:E, 0].set(edge_index[0].astype(jnp.int32))
    trg_p = jnp.full((E_p, 1), -1, jnp.int32).at[:E, 0].set(edge_index[1].astype(jnp.int32))

    n_chunks = E_p // edge_chunk

    grid_spec = pltpu.PrefetchScalarGridSpec(
        num_scalar_prefetch=0,
        grid=(n_chunks,),
        in_specs=[
            pl.BlockSpec((edge_chunk, 1), lambda j: (j, 0)),      # src (edge chunk)
            pl.BlockSpec((edge_chunk, 1), lambda j: (j, 0)),      # trg (edge chunk)
            pl.BlockSpec((N_p, F_in_p), lambda j: (0, 0)),        # x (resident)
            pl.BlockSpec((F_in_p, H_p), lambda j: (0, 0)),        # fc_w
            pl.BlockSpec((1, H_p), lambda j: (0, 0)),             # fc_b
            pl.BlockSpec((F_in_p, F_out_p), lambda j: (0, 0)),    # W_x
            pl.BlockSpec((H_p, F_out_p), lambda j: (0, 0)),       # W_agg
        ],
        out_specs=pl.BlockSpec((N_p, F_out_p), lambda j: (0, 0)),
        scratch_shapes=[pltpu.VMEM((N_p, H_p), jnp.float32),      # xw = x @ fc_w
                        pltpu.VMEM((N_p, H_p), jnp.float32)],     # max accumulator
    )

    flops = (2 * N_p * F_in_p * H_p                # xw precompute (once)
             + 2 * E_p * N_p * H_p                 # one-hot row selection per edge
             + 2 * N_p * (F_in_p + H_p) * F_out_p)  # final matmuls
    bytes_accessed = 4 * (N_p * F_in_p + F_in_p * H_p + H_p
                          + (F_in_p + H_p) * F_out_p + N_p * F_out_p) + 8 * E_p

    out_p = pl.pallas_call(
        maxpool_agg_kernel,
        out_shape=jax.ShapeDtypeStruct((N_p, F_out_p), jnp.float32),
        grid_spec=grid_spec,
        compiler_params=pltpu.CompilerParams(
            dimension_semantics=("arbitrary",),
            # Fits v7x's 64 MiB physical VMEM with headroom; all operands are
            # resident at these sizes, only src/trg chunks stream.
            vmem_limit_bytes=48 * 1024 * 1024,
        ),
        cost_estimate=pl.CostEstimate(flops=flops, transcendentals=0,
                                      bytes_accessed=bytes_accessed),
    )(src_p, trg_p, xp, fcw_p, fcb_p, wx_p, wagg_p)

    return out_p[:N, :F_out]


def reference(x, edge_index, fc_w, fc_b, weights_matrix):
    src, trg = edge_index[0], edge_index[1]
    N, _ = x.shape
    H = fc_w.shape[1]
    neigh = x[trg]
    hid = jnp.maximum(neigh @ fc_w + fc_b, 0.0)
    agg = jnp.zeros((N, H), jnp.float32).at[src].max(hid)
    concat = jnp.concatenate([x, agg], axis=1)
    return concat @ weights_matrix


if __name__ == "__main__":
    # Small shapes consistent with the module: N nodes, E edges, F_in features,
    # H hidden (pooling) dim, F_out output dim.
    N, E, F_in, H, F_out = 8, 16, 32, 64, 16

    key = jax.random.PRNGKey(0)
    k_x, k_src, k_trg, k_fcw, k_fcb, k_w = jax.random.split(key, 6)

    x = jax.random.normal(k_x, (N, F_in), dtype=jnp.float32)
    src = jax.random.randint(k_src, (E,), 0, N, dtype=jnp.int32)
    trg = jax.random.randint(k_trg, (E,), 0, N, dtype=jnp.int32)
    edge_index = jnp.stack([src, trg], axis=0)

    # Deterministic parameter init (xavier-uniform-style bounds).
    fc_bound = (6.0 / (F_in + H)) ** 0.5
    fc_w = jax.random.uniform(k_fcw, (F_in, H), jnp.float32, -fc_bound, fc_bound)
    fcb_bound = 1.0 / (F_in ** 0.5)
    fc_b = jax.random.uniform(k_fcb, (H,), jnp.float32, -fcb_bound, fcb_bound)
    w_bound = (6.0 / ((F_in + H) + F_out)) ** 0.5
    W = jax.random.uniform(k_w, (F_in + H, F_out), jnp.float32, -w_bound, w_bound)

    ref = reference(x, edge_index, fc_w, fc_b, W)

    # Full-precision path (exact one-hot gather + f32 MXU accumulation).
    out = jax.block_until_ready(maxpool_aggregator(x, edge_index, fc_w, fc_b, W))
    assert out.shape == (N, F_out)
    assert jnp.allclose(out, ref, atol=1e-4, rtol=1e-4), "f32 kernel mismatch vs reference"

    # bf16 MXU path (f32 accumulation) — sanity check with loose tolerance.
    out_bf16 = jax.block_until_ready(
        maxpool_aggregator(x, edge_index, fc_w, fc_b, W, compute_dtype=jnp.bfloat16))
    assert jnp.allclose(out_bf16, ref, atol=0.25, rtol=0.1), "bf16 kernel diverged"

    print("KERNEL_OK")
</pallas_src>

<mosaic_0001>
module attributes {stable_mosaic.version = 11 : i64} {
  func.func @maxpool_agg_kernel(%arg0: i32, %arg1: memref<16x1xi32, #tpu.memory_space<vmem>>, %arg2: memref<16x1xi32, #tpu.memory_space<vmem>>, %arg3: memref<8x128xf32, #tpu.memory_space<vmem>>, %arg4: memref<128x128xf32, #tpu.memory_space<vmem>>, %arg5: memref<1x128xf32, #tpu.memory_space<vmem>>, %arg6: memref<128x128xf32, #tpu.memory_space<vmem>>, %arg7: memref<128x128xf32, #tpu.memory_space<vmem>>, %arg8: memref<8x128xf32, #tpu.memory_space<vmem>>, %arg9: memref<8x128xf32, #tpu.memory_space<vmem>>, %arg10: memref<8x128xf32, #tpu.memory_space<vmem>>) attributes {dimension_semantics = [#tpu.dimension_semantics<arbitrary>], iteration_bounds = array<i64: 1>, scalar_prefetch = 0 : i64, scratch_operands = 2 : i64, tpu.core_type = #tpu.core_type<tc>, window_params = [{transform_indices = @transform_0, window_bounds = array<i64: 16, 1>}, {transform_indices = @transform_1, window_bounds = array<i64: 16, 1>}, {pipeline_mode = #tpu.pipeline_mode<synchronous>, transform_indices = @transform_2, window_bounds = array<i64: 8, 128>}, {pipeline_mode = #tpu.pipeline_mode<synchronous>, transform_indices = @transform_3, window_bounds = array<i64: 128, 128>}, {pipeline_mode = #tpu.pipeline_mode<synchronous>, transform_indices = @transform_4, window_bounds = array<i64: 1, 128>}, {pipeline_mode = #tpu.pipeline_mode<synchronous>, transform_indices = @transform_5, window_bounds = array<i64: 128, 128>}, {pipeline_mode = #tpu.pipeline_mode<synchronous>, transform_indices = @transform_6, window_bounds = array<i64: 128, 128>}, {pipeline_mode = #tpu.pipeline_mode<synchronous>, transform_indices = @transform_7, window_bounds = array<i64: 8, 128>}]} {
    %c0_i32 = arith.constant 0 : i32
    %0 = arith.cmpi eq, %arg0, %c0_i32 : i32
    %1 = arith.extui %0 : i1 to i32
    %c0_i32_0 = arith.constant 0 : i32
    %2 = arith.cmpi ne, %1, %c0_i32_0 : i32
    scf.if %2 {
      %cst_32 = arith.constant 0.000000e+00 : f32
      %88 = vector.broadcast %cst_32 : f32 to vector<8x128xf32>
      %c0_33 = arith.constant 0 : index
      %c0_34 = arith.constant 0 : index
      %89 = vector.load %arg10[%c0_33, %c0_34] : memref<8x128xf32, #tpu.memory_space<vmem>>, vector<8x128xf32>
      tpu.vector_store %arg10[%c0_33, %c0_34], %88 {strides = array<i32>} : memref<8x128xf32, #tpu.memory_space<vmem>>, vector<8x128xf32>,
      %c0_35 = arith.constant 0 : index
      %c0_36 = arith.constant 0 : index
      %90 = vector.load %arg3[%c0_35, %c0_36] : memref<8x128xf32, #tpu.memory_space<vmem>>, vector<8x128xf32>
      %c0_37 = arith.constant 0 : index
      %c0_38 = arith.constant 0 : index
      %91 = vector.load %arg4[%c0_37, %c0_38] : memref<128x128xf32, #tpu.memory_space<vmem>>, vector<128x128xf32>
      %cst_39 = arith.constant dense<0.000000e+00> : vector<8x128xf32>
      %92 = tpu.matmul %90, %91, %cst_39 {dimension_numbers = #tpu.dot_dimension_numbers<[1], [0], [0], [1], [0, 0, 1, 1], [], []>} : vector<8x128xf32>, vector<128x128xf32>, vector<8x128xf32> -> vector<8x128xf32>
      %c0_40 = arith.constant 0 : index
      %c0_41 = arith.constant 0 : index
      %93 = vector.load %arg9[%c0_40, %c0_41] : memref<8x128xf32, #tpu.memory_space<vmem>>, vector<8x128xf32>
      tpu.vector_store %arg9[%c0_40, %c0_41], %92 {strides = array<i32>} : memref<8x128xf32, #tpu.memory_space<vmem>>, vector<8x128xf32>,
    } else {
    }
    %c0 = arith.constant 0 : index
    %c0_1 = arith.constant 0 : index
    %3 = vector.load %arg2[%c0, %c0_1] : memref<16x1xi32, #tpu.memory_space<vmem>>, vector<16x1xi32>
    %4 = tpu.iota {dimensions = array<i32: 1>} : vector<16x8xi32>
    %5 = vector.broadcast %3 : vector<16x1xi32> to vector<16x8xi32>
    %6 = arith.cmpi eq, %5, %4 : vector<16x8xi32>
    %7 = arith.extui %6 : vector<16x8xi1> to vector<16x8xi32>
    %8 = arith.sitofp %7 : vector<16x8xi32> to vector<16x8xf32>
    %c0_2 = arith.constant 0 : index
    %c0_3 = arith.constant 0 : index
    %9 = vector.load %arg9[%c0_2, %c0_3] : memref<8x128xf32, #tpu.memory_space<vmem>>, vector<8x128xf32>
    %cst = arith.constant dense<0.000000e+00> : vector<16x128xf32>
    %10 = tpu.matmul %8, %9, %cst {dimension_numbers = #tpu.dot_dimension_numbers<[1], [0], [0], [1], [0, 0, 1, 1], [], []>} : vector<16x8xf32>, vector<8x128xf32>, vector<16x128xf32> -> vector<16x128xf32>
    %c0_4 = arith.constant 0 : index
    %c0_5 = arith.constant 0 : index
    %11 = vector.load %arg5[%c0_4, %c0_5] : memref<1x128xf32, #tpu.memory_space<vmem>>, vector<1x128xf32>
    %12 = vector.broadcast %11 : vector<1x128xf32> to vector<16x128xf32>
    %13 = arith.addf %10, %12 : vector<16x128xf32>
    %cst_6 = arith.constant 0.000000e+00 : f32
    %14 = vector.broadcast %cst_6 : f32 to vector<16x128xf32>
    %15 = arith.maximumf %13, %14 : vector<16x128xf32>
    %c0_7 = arith.constant 0 : index
    %c0_8 = arith.constant 0 : index
    %16 = vector.load %arg1[%c0_7, %c0_8] : memref<16x1xi32, #tpu.memory_space<vmem>>, vector<16x1xi32>
    %c0_i32_9 = arith.constant 0 : i32
    %17 = vector.broadcast %c0_i32_9 : i32 to vector<16x1xi32>
    %18 = arith.cmpi eq, %16, %17 : vector<16x1xi32>
    %cst_10 = arith.constant 0.000000e+00 : f32
    %19 = vector.shape_cast %18 : vector<16x1xi1> to vector<16x1xi1>
    %20 = vector.broadcast %19 : vector<16x1xi1> to vector<16x128xi1>
    %21 = vector.broadcast %cst_10 : f32 to vector<16x128xf32>
    %22 = arith.select %20, %15, %21 : vector<16x128xi1>, vector<16x128xf32>
    %cst_11 = arith.constant dense<0xFF800000> : vector<128xf32>
    %23 = vector.multi_reduction <maximumf>, %22, %cst_11 [0] : vector<16x128xf32> to vector<128xf32>
    %24 = vector.shape_cast %23 : vector<128xf32> to vector<1x128xf32>
    %c1_i32 = arith.constant 1 : i32
    %25 = vector.broadcast %c1_i32 : i32 to vector<16x1xi32>
    %26 = arith.cmpi eq, %16, %25 : vector<16x1xi32>
    %cst_12 = arith.constant 0.000000e+00 : f32
    %27 = vector.shape_cast %26 : vector<16x1xi1> to vector<16x1xi1>
    %28 = vector.broadcast %27 : vector<16x1xi1> to vector<16x128xi1>
    %29 = vector.broadcast %cst_12 : f32 to vector<16x128xf32>
    %30 = arith.select %28, %15, %29 : vector<16x128xi1>, vector<16x128xf32>
    %cst_13 = arith.constant dense<0xFF800000> : vector<128xf32>
    %31 = vector.multi_reduction <maximumf>, %30, %cst_13 [0] : vector<16x128xf32> to vector<128xf32>
    %32 = vector.shape_cast %31 : vector<128xf32> to vector<1x128xf32>
    %c2_i32 = arith.constant 2 : i32
    %33 = vector.broadcast %c2_i32 : i32 to vector<16x1xi32>
    %34 = arith.cmpi eq, %16, %33 : vector<16x1xi32>
    %cst_14 = arith.constant 0.000000e+00 : f32
    %35 = vector.shape_cast %34 : vector<16x1xi1> to vector<16x1xi1>
    %36 = vector.broadcast %35 : vector<16x1xi1> to vector<16x128xi1>
    %37 = vector.broadcast %cst_14 : f32 to vector<16x128xf32>
    %38 = arith.select %36, %15, %37 : vector<16x128xi1>, vector<16x128xf32>
    %cst_15 = arith.constant dense<0xFF800000> : vector<128xf32>
    %39 = vector.multi_reduction <maximumf>, %38, %cst_15 [0] : vector<16x128xf32> to vector<128xf32>
    %40 = vector.shape_cast %39 : vector<128xf32> to vector<1x128xf32>
    %c3_i32 = arith.constant 3 : i32
    %41 = vector.broadcast %c3_i32 : i32 to vector<16x1xi32>
    %42 = arith.cmpi eq, %16, %41 : vector<16x1xi32>
    %cst_16 = arith.constant 0.000000e+00 : f32
    %43 = vector.shape_cast %42 : vector<16x1xi1> to vector<16x1xi1>
    %44 = vector.broadcast %43 : vector<16x1xi1> to vector<16x128xi1>
    %45 = vector.broadcast %cst_16 : f32 to vector<16x128xf32>
    %46 = arith.select %44, %15, %45 : vector<16x128xi1>, vector<16x128xf32>
    %cst_17 = arith.constant dense<0xFF800000> : vector<128xf32>
    %47 = vector.multi_reduction <maximumf>, %46, %cst_17 [0] : vector<16x128xf32> to vector<128xf32>
    %48 = vector.shape_cast %47 : vector<128xf32> to vector<1x128xf32>
    %c4_i32 = arith.constant 4 : i32
    %49 = vector.broadcast %c4_i32 : i32 to vector<16x1xi32>
    %50 = arith.cmpi eq, %16, %49 : vector<16x1xi32>
    %cst_18 = arith.constant 0.000000e+00 : f32
    %51 = vector.shape_cast %50 : vector<16x1xi1> to vector<16x1xi1>
    %52 = vector.broadcast %51 : vector<16x1xi1> to vector<16x128xi1>
    %53 = vector.broadcast %cst_18 : f32 to vector<16x128xf32>
    %54 = arith.select %52, %15, %53 : vector<16x128xi1>, vector<16x128xf32>
    %cst_19 = arith.constant dense<0xFF800000> : vector<128xf32>
    %55 = vector.multi_reduction <maximumf>, %54, %cst_19 [0] : vector<16x128xf32> to vector<128xf32>
    %56 = vector.shape_cast %55 : vector<128xf32> to vector<1x128xf32>
    %c5_i32 = arith.constant 5 : i32
    %57 = vector.broadcast %c5_i32 : i32 to vector<16x1xi32>
    %58 = arith.cmpi eq, %16, %57 : vector<16x1xi32>
    %cst_20 = arith.constant 0.000000e+00 : f32
    %59 = vector.shape_cast %58 : vector<16x1xi1> to vector<16x1xi1>
    %60 = vector.broadcast %59 : vector<16x1xi1> to vector<16x128xi1>
    %61 = vector.broadcast %cst_20 : f32 to vector<16x128xf32>
    %62 = arith.select %60, %15, %61 : vector<16x128xi1>, vector<16x128xf32>
    %cst_21 = arith.constant dense<0xFF800000> : vector<128xf32>
    %63 = vector.multi_reduction <maximumf>, %62, %cst_21 [0] : vector<16x128xf32> to vector<128xf32>
    %64 = vector.shape_cast %63 : vector<128xf32> to vector<1x128xf32>
    %c6_i32 = arith.constant 6 : i32
    %65 = vector.broadcast %c6_i32 : i32 to vector<16x1xi32>
    %66 = arith.cmpi eq, %16, %65 : vector<16x1xi32>
    %cst_22 = arith.constant 0.000000e+00 : f32
    %67 = vector.shape_cast %66 : vector<16x1xi1> to vector<16x1xi1>
    %68 = vector.broadcast %67 : vector<16x1xi1> to vector<16x128xi1>
    %69 = vector.broadcast %cst_22 : f32 to vector<16x128xf32>
    %70 = arith.select %68, %15, %69 : vector<16x128xi1>, vector<16x128xf32>
    %cst_23 = arith.constant dense<0xFF800000> : vector<128xf32>
    %71 = vector.multi_reduction <maximumf>, %70, %cst_23 [0] : vector<16x128xf32> to vector<128xf32>
    %72 = vector.shape_cast %71 : vector<128xf32> to vector<1x128xf32>
    %c7_i32 = arith.constant 7 : i32
    %73 = vector.broadcast %c7_i32 : i32 to vector<16x1xi32>
    %74 = arith.cmpi eq, %16, %73 : vector<16x1xi32>
    %cst_24 = arith.constant 0.000000e+00 : f32
    %75 = vector.shape_cast %74 : vector<16x1xi1> to vector<16x1xi1>
    %76 = vector.broadcast %75 : vector<16x1xi1> to vector<16x128xi1>
    %77 = vector.broadcast %cst_24 : f32 to vector<16x128xf32>
    %78 = arith.select %76, %15, %77 : vector<16x128xi1>, vector<16x128xf32>
    %cst_25 = arith.constant dense<0xFF800000> : vector<128xf32>
    %79 = vector.multi_reduction <maximumf>, %78, %cst_25 [0] : vector<16x128xf32> to vector<128xf32>
    %80 = vector.shape_cast %79 : vector<128xf32> to vector<1x128xf32>
    %81 = tpu.concatenate %24, %32, %40, %48, %56, %64, %72, %80 in 0 : vector<1x128xf32>, vector<1x128xf32>, vector<1x128xf32>, vector<1x128xf32>, vector<1x128xf32>, vector<1x128xf32>, vector<1x128xf32>, vector<1x128xf32> -> vector<8x128xf32>
    %c0_26 = arith.constant 0 : index
    %c0_27 = arith.constant 0 : index
    %82 = vector.load %arg10[%c0_26, %c0_27] : memref<8x128xf32, #tpu.memory_space<vmem>>, vector<8x128xf32>
    %83 = arith.maximumf %82, %81 : vector<8x128xf32>
    %c0_28 = arith.constant 0 : index
    %c0_29 = arith.constant 0 : index
    %84 = vector.load %arg10[%c0_28, %c0_29] : memref<8x128xf32, #tpu.memory_space<vmem>>, vector<8x128xf32>
    tpu.vector_store %arg10[%c0_28, %c0_29], %83 {strides = array<i32>} : memref<8x128xf32, #tpu.memory_space<vmem>>, vector<8x128xf32>,
    %c0_i32_30 = arith.constant 0 : i32
    %85 = arith.cmpi eq, %arg0, %c0_i32_30 : i32
    %86 = arith.extui %85 : i1 to i32
    %c0_i32_31 = arith.constant 0 : i32
    %87 = arith.cmpi ne, %86, %c0_i32_31 : i32
    scf.if %87 {
      %c0_32 = arith.constant 0 : index
      %c0_33 = arith.constant 0 : index
      %88 = vector.load %arg3[%c0_32, %c0_33] : memref<8x128xf32, #tpu.memory_space<vmem>>, vector<8x128xf32>
      %c0_34 = arith.constant 0 : index
      %c0_35 = arith.constant 0 : index
      %89 = vector.load %arg6[%c0_34, %c0_35] : memref<128x128xf32, #tpu.memory_space<vmem>>, vector<128x128xf32>
      %cst_36 = arith.constant dense<0.000000e+00> : vector<8x128xf32>
      %90 = tpu.matmul %88, %89, %cst_36 {dimension_numbers = #tpu.dot_dimension_numbers<[1], [0], [0], [1], [0, 0, 1, 1], [], []>} : vector<8x128xf32>, vector<128x128xf32>, vector<8x128xf32> -> vector<8x128xf32>
      %c0_37 = arith.constant 0 : index
      %c0_38 = arith.constant 0 : index
      %91 = vector.load %arg10[%c0_37, %c0_38] : memref<8x128xf32, #tpu.memory_space<vmem>>, vector<8x128xf32>
      %c0_39 = arith.constant 0 : index
      %c0_40 = arith.constant 0 : index
      %92 = vector.load %arg7[%c0_39, %c0_40] : memref<128x128xf32, #tpu.memory_space<vmem>>, vector<128x128xf32>
      %cst_41 = arith.constant dense<0.000000e+00> : vector<8x128xf32>
      %93 = tpu.matmul %91, %92, %cst_41 {dimension_numbers = #tpu.dot_dimension_numbers<[1], [0], [0], [1], [0, 0, 1, 1], [], []>} : vector<8x128xf32>, vector<128x128xf32>, vector<8x128xf32> -> vector<8x128xf32>
      %94 = arith.addf %90, %93 : vector<8x128xf32>
      %c0_42 = arith.constant 0 : index
      %c0_43 = arith.constant 0 : index
      %95 = vector.load %arg8[%c0_42, %c0_43] : memref<8x128xf32, #tpu.memory_space<vmem>>, vector<8x128xf32>
      tpu.vector_store %arg8[%c0_42, %c0_43], %94 {strides = array<i32>} : memref<8x128xf32, #tpu.memory_space<vmem>>, vector<8x128xf32>,
    } else {
    }
    return
  }
  func.func @transform_0(%arg0: i32) -> (i32, i32) {
    %c0_i32 = arith.constant 0 : i32
    %c0_i32_0 = arith.constant 0 : i32
    return %arg0, %c0_i32 : i32, i32
  }
  func.func @transform_1(%arg0: i32) -> (i32, i32) {
    %c0_i32 = arith.constant 0 : i32
    %c0_i32_0 = arith.constant 0 : i32
    return %arg0, %c0_i32 : i32, i32
  }
  func.func @transform_2(%arg0: i32) -> (i32, i32) {
    %c0_i32 = arith.constant 0 : i32
    %c0_i32_0 = arith.constant 0 : i32
    %c0_i32_1 = arith.constant 0 : i32
    return %c0_i32, %c0_i32_0 : i32, i32
  }
  func.func @transform_3(%arg0: i32) -> (i32, i32) {
    %c0_i32 = arith.constant 0 : i32
    %c0_i32_0 = arith.constant 0 : i32
    %c0_i32_1 = arith.constant 0 : i32
    return %c0_i32, %c0_i32_0 : i32, i32
  }
  func.func @transform_4(%arg0: i32) -> (i32, i32) {
    %c0_i32 = arith.constant 0 : i32
    %c0_i32_0 = arith.constant 0 : i32
    %c0_i32_1 = arith.constant 0 : i32
    return %c0_i32, %c0_i32_0 : i32, i32
  }
  func.func @transform_5(%arg0: i32) -> (i32, i32) {
    %c0_i32 = arith.constant 0 : i32
    %c0_i32_0 = arith.constant 0 : i32
    %c0_i32_1 = arith.constant 0 : i32
    return %c0_i32, %c0_i32_0 : i32, i32
  }
  func.func @transform_6(%arg0: i32) -> (i32, i32) {
    %c0_i32 = arith.constant 0 : i32
    %c0_i32_0 = arith.constant 0 : i32
    %c0_i32_1 = arith.constant 0 : i32
    return %c0_i32, %c0_i32_0 : i32, i32
  }
  func.func @transform_7(%arg0: i32) -> (i32, i32) {
    %c0_i32 = arith.constant 0 : i32
    %c0_i32_0 = arith.constant 0 : i32
    %c0_i32_1 = arith.constant 0 : i32
    return %c0_i32, %c0_i32_0 : i32, i32
  }
}

</mosaic_0001>

<llo_original>
// kernel: tpu_custom_call.1
$region0: #{tpu_custom_call.1}
  #allocation0 [shape = 'u32[]', space=smem, size = 0x4, offset = 0x4, fixed_abs, tag = 'smem constant byte address 0x4 - core index']
  #allocation1 [shape = 'u32[144,128]{1,0:T(1,128)}', space=vmem, size = 0x12000, scoped, tag = 'internal scratch']
  #allocation2 [shape = 'f32[8,128]{1,0:T(8,128)}', space=vmem, size = 0x1000, scoped, tag = 'scratch operand']
  #allocation3 [shape = 'f32[8,128]{1,0:T(8,128)}', space=vmem, size = 0x1000, scoped, tag = 'scratch operand']
  %s0 = inlined_call_operand.vmem [shape: s32[16,1], index: 0, kind: input, shape index: {}]
  %s1 = inlined_call_operand.vmem [shape: s32[16,1], index: 1, kind: input, shape index: {}]
  %s2 = inlined_call_operand.vmem [shape: f32[8,128], index: 2, kind: input, shape index: {}]
  %s3 = inlined_call_operand.hbm [shape: f32[128,128], index: 3, kind: input, shape index: {}]
  %s4 = inlined_call_operand.vmem [shape: f32[1,128], index: 4, kind: input, shape index: {}]
  %s5 = inlined_call_operand.hbm [shape: f32[128,128], index: 5, kind: input, shape index: {}]
  %s6 = inlined_call_operand.hbm [shape: f32[128,128], index: 6, kind: input, shape index: {}]
  %s7 = inlined_call_operand.hbm [shape: f32[8,128], index: 7, kind: output, shape index: {}]
  %s8 = sld [smem:[#allocation0]]
  $region58: #{tpu_custom_call.1} parent=0
    _
  %s10 = ssub.s32 1, %s8
  %s11 = scalar_select 0, %s10, %s8
  $region1: #{tpu_custom_call.1} parent=0
    #allocation4 [shape = 'u8[65536]{0}', space=vmem, size = 0x10000, scoped, tag = 'input window, operand 3, single buffered']
    #allocation5 [shape = 's32[1]{0}', space=sflag, size = 0x4, scoped, tag = 'scoped memory for tpu_custom_call.1']
    #allocation6 [shape = 's32[1]{0}', space=sflag, size = 0x4, scoped, tag = 'scoped memory for tpu_custom_call.1']
    #allocation7 [shape = 'u8[65536]{0}', space=vmem, size = 0x10000, scoped, tag = 'input window, operand 5, single buffered']
    #allocation8 [shape = 's32[1]{0}', space=sflag, size = 0x4, scoped, tag = 'scoped memory for tpu_custom_call.1']
    #allocation9 [shape = 'u8[65536]{0}', space=vmem, size = 0x10000, scoped, tag = 'input window, operand 6, single buffered']
    #allocation10 [shape = 'u8[4096]{0}', space=vmem, size = 0x1000, scoped, tag = 'output window, operand 0, single buffered']
    %12 = vsyncpa [#allocation5], 0
    %13 = vsyncpa [#allocation8], 0
    %14 = vsyncpa [#allocation6], 0
    // Predicated region
    $region2: #{tpu_custom_call.1} parent=1 // pred_check
      _
    $region3: #{tpu_custom_call.1} parent=1 // pred_check_branch
      %16 = sbr.rel (0) target = $region5
    $region4: #{tpu_custom_call.1} parent=1 // pred_region
      _
    $region5: #{tpu_custom_call.1} parent=1 // pred_fallthru
      _
    // Predicated region
    $region6: #{tpu_custom_call.1} parent=1 // pred_check
      _
    $region7: #{tpu_custom_call.1} parent=1 // pred_check_branch
      %18 = sbr.rel (0) target = $region9
    $region8: #{tpu_custom_call.1} parent=1 // pred_region
      _
    $region9: #{tpu_custom_call.1} parent=1 // pred_fallthru
      _
    // Predicated region
    $region10: #{tpu_custom_call.1} parent=1 // pred_check
      _
    $region11: #{tpu_custom_call.1} parent=1 // pred_check_branch
      %20 = sbr.rel (0) target = $region13
    $region12: #{tpu_custom_call.1} parent=1 // pred_region
      _
    $region13: #{tpu_custom_call.1} parent=1 // pred_fallthru
      _
    // Predicated region
    $region14: #{tpu_custom_call.1} parent=1 // pred_check
      _
    $region15: #{tpu_custom_call.1} parent=1 // pred_check_branch
      %22 = sbr.rel (0) target = $region17
    $region16: #{tpu_custom_call.1} parent=1 // pred_region
      %s24 = ssub.s32 2048, 2048
      %25 = vsyncadd [#allocation5], %s24
      %s26 = sshll.u32 [#allocation4], 4
      %s27 = int_to_ptr.vmem [resolvable:$true] %s26
      %32 = dma.hbm_to_vmem [thread:$0]  %s3, 2048, %s27, [#allocation5], 128, 128, 8
    $region17: #{tpu_custom_call.1} parent=1 // pred_fallthru
      _
    // Predicated region
    $region18: #{tpu_custom_call.1} parent=1 // pred_check
      _
    $region19: #{tpu_custom_call.1} parent=1 // pred_check_branch
      %34 = sbr.rel (0) target = $region21
    $region20: #{tpu_custom_call.1} parent=1 // pred_region
      _
    $region21: #{tpu_custom_call.1} parent=1 // pred_fallthru
      _
    // Predicated region
    $region22: #{tpu_custom_call.1} parent=1 // pred_check
      _
    $region23: #{tpu_custom_call.1} parent=1 // pred_check_branch
      %36 = sbr.rel (0) target = $region25
    $region24: #{tpu_custom_call.1} parent=1 // pred_region
      %s38 = ssub.s32 2048, 2048
      %39 = vsyncadd [#allocation8], %s38
      %s40 = sshll.u32 [#allocation7], 4
      %s41 = int_to_ptr.vmem [resolvable:$true] %s40
      %46 = dma.hbm_to_vmem [thread:$0]  %s5, 2048, %s41, [#allocation8], 128, 128, 8
    $region25: #{tpu_custom_call.1} parent=1 // pred_fallthru
      _
    // Predicated region
    $region26: #{tpu_custom_call.1} parent=1 // pred_check
      _
    $region27: #{tpu_custom_call.1} parent=1 // pred_check_branch
      %48 = sbr.rel (0) target = $region29
    $region28: #{tpu_custom_call.1} parent=1 // pred_region
      %s50 = ssub.s32 2048, 2048
      %51 = vsyncadd [#allocation8], %s50
      %s52 = sshll.u32 [#allocation9], 4
      %s53 = int_to_ptr.vmem [resolvable:$true] %s52
      %58 = dma.hbm_to_vmem [thread:$0]  %s6, 2048, %s53, [#allocation8], 128, 128, 8
    $region29: #{tpu_custom_call.1} parent=1 // pred_fallthru
      _
    // Predicated region
    $region30: #{tpu_custom_call.1} parent=1 // pred_check
      _
    $region31: #{tpu_custom_call.1} parent=1 // pred_check_branch
      %60 = sbr.rel (0) target = $region33
    $region32: #{tpu_custom_call.1} parent=1 // pred_region
      %61 = dma.done [#allocation5], 2048
    $region33: #{tpu_custom_call.1} parent=1 // pred_fallthru
      _
    // Predicated region
    $region34: #{tpu_custom_call.1} parent=1 // pred_check
      _
    $region35: #{tpu_custom_call.1} parent=1 // pred_check_branch
      %63 = sbr.rel (0) target = $region37
    $region36: #{tpu_custom_call.1} parent=1 // pred_region
      %64 = dma.done [#allocation8], 2048
    $region37: #{tpu_custom_call.1} parent=1 // pred_fallthru
      _
    // Predicated region
    $region38: #{tpu_custom_call.1} parent=1 // pred_check
      _
    $region39: #{tpu_custom_call.1} parent=1 // pred_check_branch
      %66 = sbr.rel (0) target = $region41
    $region40: #{tpu_custom_call.1} parent=1 // pred_region
      %67 = dma.done [#allocation8], 2048
    $region41: #{tpu_custom_call.1} parent=1 // pred_fallthru
      _
    %p68 = scmp.eq.s32.totalorder 0, 0
    // Predicated region
    $region42: #{tpu_custom_call.1} parent=1 // pred_check
      %p69 = pneg %p68
    $region43: #{tpu_custom_call.1} parent=1 // pred_check_branch
      %71 = sbr.rel (%p69) target = $region45
    $region44: #{tpu_custom_call.1} parent=1 // pred_region
      %72 = vst [vmem:[#allocation3] sm:$0xff] 0.0
      %v73 = vld [vmem:[%s2] sm:$0xff]
      %v74 = vld [vmem:[#allocation4] sm:$0xff]
      %v75 = vld [vmem:[#allocation4 + $0x8] sm:$0xff]
      %v76 = vld [vmem:[#allocation4 + $0x10] sm:$0xff]
      %v77 = vld [vmem:[#allocation4 + $0x18] sm:$0xff]
      %v78 = vld [vmem:[#allocation4 + $0x20] sm:$0xff]
      %v79 = vld [vmem:[#allocation4 + $0x28] sm:$0xff]
      %v80 = vld [vmem:[#allocation4 + $0x30] sm:$0xff]
      %v81 = vld [vmem:[#allocation4 + $0x38] sm:$0xff]
      %v82 = vld [vmem:[#allocation4 + $0x40] sm:$0xff]
      %v83 = vld [vmem:[#allocation4 + $0x48] sm:$0xff]
      %v84 = vld [vmem:[#allocation4 + $0x50] sm:$0xff]
      %v85 = vld [vmem:[#allocation4 + $0x58] sm:$0xff]
      %v86 = vld [vmem:[#allocation4 + $0x60] sm:$0xff]
      %v87 = vld [vmem:[#allocation4 + $0x68] sm:$0xff]
      %v88 = vld [vmem:[#allocation4 + $0x70] sm:$0xff]
      %v89 = vld [vmem:[#allocation4 + $0x78] sm:$0xff]
      %90 = vmatprep.subr.mxu0 0.0
      %91 = vmatpush1.msra.mxu0 %v74
      %92 = vmatprep.subr.mxu0 0.0
      %93 = vmatpush1.msra.mxu0 %v75
      %94 = vmatprep.subr.mxu0 0.0
      %95 = vmatpush1.msra.mxu0 %v76
      %96 = vmatprep.subr.mxu0 0.0
      %97 = vmatpush1.msra.mxu0 %v77
      %98 = vmatprep.subr.mxu0 0.0
      %99 = vmatpush1.msra.mxu0 %v78
      %100 = vmatprep.subr.mxu0 0.0
      %101 = vmatpush1.msra.mxu0 %v79
      %102 = vmatprep.subr.mxu0 0.0
      %103 = vmatpush1.msra.mxu0 %v80
      %104 = vmatprep.subr.mxu0 0.0
      %105 = vmatpush1.msra.mxu0 %v81
      %106 = vmatprep.subr.mxu0 0.0
      %107 = vmatpush1.msra.mxu0 %v82
      %108 = vmatprep.subr.mxu0 0.0
      %109 = vmatpush1.msra.mxu0 %v83
      %110 = vmatprep.subr.mxu0 0.0
      %111 = vmatpush1.msra.mxu0 %v84
      %112 = vmatprep.subr.mxu0 0.0
      %113 = vmatpush1.msra.mxu0 %v85
      %114 = vmatprep.subr.mxu0 0.0
      %115 = vmatpush1.msra.mxu0 %v86
      %116 = vmatprep.subr.mxu0 0.0
      %117 = vmatpush1.msra.mxu0 %v87
      %118 = vmatprep.subr.mxu0 0.0
      %119 = vmatpush1.msra.mxu0 %v88
      %120 = vmatprep.subr.mxu0 0.0
      %121 = vmatpush1.msra.mxu0 %v89
      %122 = vmatprep.subr.mxu0 0.0
      %123 = vmatpush1.msra.mxu0 0.0
      %124 = vmatprep.subr.mxu0 0.0
      %125 = vmatpush1.msra.mxu0 0.0
      %126 = vmatprep.subr.mxu0 0.0
      %127 = vmatpush1.msra.mxu0 0.0
      %128 = vmatprep.subr.mxu0 0.0
      %129 = vmatpush1.msra.mxu0 0.0
      %130 = vmatprep.subr.mxu0 0.0
      %131 = vmatpush1.msra.mxu0 0.0
      %132 = vmatprep.subr.mxu0 0.0
      %133 = vmatpush1.msra.mxu0 0.0
      %134 = vmatprep.subr.mxu0 0.0
      %135 = vmatpush1.msra.mxu0 0.0
      %136 = vmatprep.subr.mxu0 0.0
      %137 = vmatpush1.msra.mxu0 0.0
      %138 = vmatprep.subr.mxu0 0.0
      %139 = vmatpush1.msra.mxu0 0.0
      %140 = vmatprep.subr.mxu0 0.0
      %141 = vmatpush1.msra.mxu0 0.0
      %142 = vmatprep.subr.mxu0 0.0
      %143 = vmatpush1.msra.mxu0 0.0
      %144 = vmatprep.subr.mxu0 0.0
      %145 = vmatpush1.msra.mxu0 0.0
      %146 = vmatprep.subr.mxu0 0.0
      %147 = vmatpush1.msra.mxu0 0.0
      %148 = vmatprep.subr.mxu0 0.0
      %149 = vmatpush1.msra.mxu0 0.0
      %150 = vmatprep.subr.mxu0 0.0
      %151 = vmatpush1.msra.mxu0 0.0
      %152 = vmatprep.subr.mxu0 0.0
      %153 = vmatpush1.msra.mxu0 0.0
      %154 = vmatprep.mubr.f32.mxu0 0.0
      %155 = vmatmul.mubr.f32.gmra.mrb[0].mxu0 %v73
      %v156 = vpop.f32.mrb[0].mxu0
      %v157 = vadd.f32 0.0, %v156
      %v158 = vpop.f32.mrb[0].mxu0
      %159 = vdwg.mxu0
      %160 = vst [vmem:[#allocation2] sm:$0xff] %v157
    $region45: #{tpu_custom_call.1} parent=1 // pred_fallthru
      _
    %v161 = vld [vmem:[%s1] sm:$0xff]
    %v162 = vld [vmem:[%s1 + $0x8] sm:$0xff]
    %v163 = vlaneseq
    %v164 = vand.u32 %v163, 127
    %165 = vset.pattern.permute.xlu0 0
    %166 = vperm.xlu0 %165, %v161
    %v167 = vpop.permute.xlu0 %166
    %168 = vset.pattern.permute.xlu0 0
    %169 = vperm.xlu0 %168, %v162
    %v170 = vpop.permute.xlu0 %169
    %vm171 = vcmp.eq.s32.totalorder %v167, %v164
    %vm172 = vcmp.eq.s32.totalorder %v170, %v164
    %v173 = vsel %vm171, 1, 0
    %v174 = vsel %vm172, 1, 0
    %v175 = vcvt.s32.f32 %v173
    %v176 = vcvt.s32.f32 %v174
    %v177 = vld [vmem:[#allocation2] sm:$0xff]
    %v178 = vld [vmem:[%s4] sm:$0x1]
    %v180 = vlaneseq
    %v181 = vshrl.u32 %v180, 7
    %v182 = vsub.s32 0, %v181
    %v183 = vrot.slane %v178, %v182
    %vm185 = vcmask 64512
    %v187 = vsel %vm185, %v175, 0
    %v190 = vsel %vm185, %v176, 0
    %192 = vmatprep.subr.mxu0 0.0
    %193 = vmatpush1.msra.mxu0 %v177
    %194 = vmatprep.subr.mxu0 0.0
    %195 = vmatpush1.msra.mxu0 0.0
    %196 = vmatprep.subr.mxu0 0.0
    %197 = vmatpush1.msra.mxu0 0.0
    %198 = vmatprep.subr.mxu0 0.0
    %199 = vmatpush1.msra.mxu0 0.0
    %200 = vmatprep.subr.mxu0 0.0
    %201 = vmatpush1.msra.mxu0 0.0
    %202 = vmatprep.subr.mxu0 0.0
    %203 = vmatpush1.msra.mxu0 0.0
    %204 = vmatprep.subr.mxu0 0.0
    %205 = vmatpush1.msra.mxu0 0.0
    %206 = vmatprep.subr.mxu0 0.0
    %207 = vmatpush1.msra.mxu0 0.0
    %208 = vmatprep.subr.mxu0 0.0
    %209 = vmatpush1.msra.mxu0 0.0
    %210 = vmatprep.subr.mxu0 0.0
    %211 = vmatpush1.msra.mxu0 0.0
    %212 = vmatprep.subr.mxu0 0.0
    %213 = vmatpush1.msra.mxu0 0.0
    %214 = vmatprep.subr.mxu0 0.0
    %215 = vmatpush1.msra.mxu0 0.0
    %216 = vmatprep.subr.mxu0 0.0
    %217 = vmatpush1.msra.mxu0 0.0
    %218 = vmatprep.subr.mxu0 0.0
    %219 = vmatpush1.msra.mxu0 0.0
    %220 = vmatprep.subr.mxu0 0.0
    %221 = vmatpush1.msra.mxu0 0.0
    %222 = vmatprep.subr.mxu0 0.0
    %223 = vmatpush1.msra.mxu0 0.0
    %224 = vmatprep.subr.mxu0 0.0
    %225 = vmatpush1.msra.mxu0 0.0
    %226 = vmatprep.subr.mxu0 0.0
    %227 = vmatpush1.msra.mxu0 0.0
    %228 = vmatprep.subr.mxu0 0.0
    %229 = vmatpush1.msra.mxu0 0.0
    %230 = vmatprep.subr.mxu0 0.0
    %231 = vmatpush1.msra.mxu0 0.0
    %232 = vmatprep.subr.mxu0 0.0
    %233 = vmatpush1.msra.mxu0 0.0
    %234 = vmatprep.subr.mxu0 0.0
    %235 = vmatpush1.msra.mxu0 0.0
    %236 = vmatprep.subr.mxu0 0.0
    %237 = vmatpush1.msra.mxu0 0.0
    %238 = vmatprep.subr.mxu0 0.0
    %239 = vmatpush1.msra.mxu0 0.0
    %240 = vmatprep.subr.mxu0 0.0
    %241 = vmatpush1.msra.mxu0 0.0
    %242 = vmatprep.subr.mxu0 0.0
    %243 = vmatpush1.msra.mxu0 0.0
    %244 = vmatprep.subr.mxu0 0.0
    %245 = vmatpush1.msra.mxu0 0.0
    %246 = vmatprep.subr.mxu0 0.0
    %247 = vmatpush1.msra.mxu0 0.0
    %248 = vmatprep.subr.mxu0 0.0
    %249 = vmatpush1.msra.mxu0 0.0
    %250 = vmatprep.subr.mxu0 0.0
    %251 = vmatpush1.msra.mxu0 0.0
    %252 = vmatprep.subr.mxu0 0.0
    %253 = vmatpush1.msra.mxu0 0.0
    %254 = vmatprep.subr.mxu0 0.0
    %255 = vmatpush1.msra.mxu0 0.0
    %256 = vmatprep.mubr.f32.mxu0 0.0
    %257 = vmatmul.mubr.f32.gmra.mrb[0].mxu0 %v187
    %v258 = vpop.f32.mrb[0].mxu0
    %v259 = vadd.f32 %v183, %v258
    %v260 = vpop.f32.mrb[0].mxu0
    %261 = vmatprep.mubr.f32.mxu0 0.0
    %262 = vmatmul.mubr.f32.gmra.mrb[0].mxu0 %v190
    %v263 = vpop.f32.mrb[0].mxu0
    %v264 = vadd.f32 %v183, %v263
    %v265 = vpop.f32.mrb[0].mxu0
    %266 = vdwg.mxu0
    %v267 = vmax.f32 %v259, 0.0
    %v268 = vmax.f32 %v264, 0.0
    %v269 = vld [vmem:[%s0] sm:$0xff]
    %v270 = vld [vmem:[%s0 + $0x8] sm:$0xff]
    %vm271 = vcmp.eq.s32.totalorder %v269, 0
    %vm272 = vcmp.eq.s32.totalorder %v270, 0
    %v273 = vsel %vm271, 1, 0
    %v274 = vsel %vm272, 1, 0
    %275 = vset.pattern.permute.xlu0 0
    %276 = vperm.xlu0 %275, %v273
    %v277 = vpop.permute.xlu0 %276
    %278 = vset.pattern.permute.xlu0 0
    %279 = vperm.xlu0 %278, %v274
    %v280 = vpop.permute.xlu0 %279
    %vm281 = vcmp.eq.s32.totalorder %v277, 1
    %vm282 = vcmp.eq.s32.totalorder %v280, 1
    %v283 = vsel %vm281, %v267, 0.0
    %v284 = vsel %vm282, %v268, 0.0
    %v285 = vmax.f32 %v283, %v284
    %v286 = vrot.slane %v285, 4
    %v287 = vmax.f32 %v285, %v286
    %v288 = vrot.slane %v287, 2
    %v289 = vmax.f32 %v287, %v288
    %v290 = vrot.slane %v289, 1
    %v291 = vmax.f32 %v289, %v290
    %vm292 = vcmp.eq.s32.totalorder %v269, 1
    %vm293 = vcmp.eq.s32.totalorder %v270, 1
    %v294 = vsel %vm292, 1, 0
    %v295 = vsel %vm293, 1, 0
    %296 = vset.pattern.permute.xlu0 0
    %297 = vperm.xlu0 %296, %v294
    %v298 = vpop.permute.xlu0 %297
    %299 = vset.pattern.permute.xlu0 0
    %300 = vperm.xlu0 %299, %v295
    %v301 = vpop.permute.xlu0 %300
    %vm302 = vcmp.eq.s32.totalorder %v298, 1
    %vm303 = vcmp.eq.s32.totalorder %v301, 1
    %v304 = vsel %vm302, %v267, 0.0
    %v305 = vsel %vm303, %v268, 0.0
    %v306 = vmax.f32 %v304, %v305
    %v307 = vrot.slane %v306, 4
    %v308 = vmax.f32 %v306, %v307
    %v309 = vrot.slane %v308, 2
    %v310 = vmax.f32 %v308, %v309
    %v311 = vrot.slane %v310, 1
    %v312 = vmax.f32 %v310, %v311
    %vm313 = vcmp.eq.s32.totalorder %v269, 2
    %vm314 = vcmp.eq.s32.totalorder %v270, 2
    %v315 = vsel %vm313, 1, 0
    %v316 = vsel %vm314, 1, 0
    %317 = vset.pattern.permute.xlu0 0
    %318 = vperm.xlu0 %317, %v315
    %v319 = vpop.permute.xlu0 %318
    %320 = vset.pattern.permute.xlu0 0
    %321 = vperm.xlu0 %320, %v316
    %v322 = vpop.permute.xlu0 %321
    %vm323 = vcmp.eq.s32.totalorder %v319, 1
    %vm324 = vcmp.eq.s32.totalorder %v322, 1
    %v325 = vsel %vm323, %v267, 0.0
    %v326 = vsel %vm324, %v268, 0.0
    %v327 = vmax.f32 %v325, %v326
    %v328 = vrot.slane %v327, 4
    %v329 = vmax.f32 %v327, %v328
    %v330 = vrot.slane %v329, 2
    %v331 = vmax.f32 %v329, %v330
    %v332 = vrot.slane %v331, 1
    %v333 = vmax.f32 %v331, %v332
    %vm334 = vcmp.eq.s32.totalorder %v269, 3
    %vm335 = vcmp.eq.s32.totalorder %v270, 3
    %v336 = vsel %vm334, 1, 0
    %v337 = vsel %vm335, 1, 0
    %338 = vset.pattern.permute.xlu0 0
    %339 = vperm.xlu0 %338, %v336
    %v340 = vpop.permute.xlu0 %339
    %341 = vset.pattern.permute.xlu0 0
    %342 = vperm.xlu0 %341, %v337
    %v343 = vpop.permute.xlu0 %342
    %vm344 = vcmp.eq.s32.totalorder %v340, 1
    %vm345 = vcmp.eq.s32.totalorder %v343, 1
    %v346 = vsel %vm344, %v267, 0.0
    %v347 = vsel %vm345, %v268, 0.0
    %v348 = vmax.f32 %v346, %v347
    %v349 = vrot.slane %v348, 4
    %v350 = vmax.f32 %v348, %v349
    %v351 = vrot.slane %v350, 2
    %v352 = vmax.f32 %v350, %v351
    %v353 = vrot.slane %v352, 1
    %v354 = vmax.f32 %v352, %v353
    %vm355 = vcmp.eq.s32.totalorder %v269, 4
    %vm356 = vcmp.eq.s32.totalorder %v270, 4
    %v357 = vsel %vm355, 1, 0
    %v358 = vsel %vm356, 1, 0
    %359 = vset.pattern.permute.xlu0 0
    %360 = vperm.xlu0 %359, %v357
    %v361 = vpop.permute.xlu0 %360
    %362 = vset.pattern.permute.xlu0 0
    %363 = vperm.xlu0 %362, %v358
    %v364 = vpop.permute.xlu0 %363
    %vm365 = vcmp.eq.s32.totalorder %v361, 1
    %vm366 = vcmp.eq.s32.totalorder %v364, 1
    %v367 = vsel %vm365, %v267, 0.0
    %v368 = vsel %vm366, %v268, 0.0
    %v369 = vmax.f32 %v367, %v368
    %v370 = vrot.slane %v369, 4
    %v371 = vmax.f32 %v369, %v370
    %v372 = vrot.slane %v371, 2
    %v373 = vmax.f32 %v371, %v372
    %v374 = vrot.slane %v373, 1
    %v375 = vmax.f32 %v373, %v374
    %vm376 = vcmp.eq.s32.totalorder %v269, 5
    %vm377 = vcmp.eq.s32.totalorder %v270, 5
    %v378 = vsel %vm376, 1, 0
    %v379 = vsel %vm377, 1, 0
    %380 = vset.pattern.permute.xlu0 0
    %381 = vperm.xlu0 %380, %v378
    %v382 = vpop.permute.xlu0 %381
    %383 = vset.pattern.permute.xlu0 0
    %384 = vperm.xlu0 %383, %v379
    %v385 = vpop.permute.xlu0 %384
    %vm386 = vcmp.eq.s32.totalorder %v382, 1
    %vm387 = vcmp.eq.s32.totalorder %v385, 1
    %v388 = vsel %vm386, %v267, 0.0
    %v389 = vsel %vm387, %v268, 0.0
    %v390 = vmax.f32 %v388, %v389
    %v391 = vrot.slane %v390, 4
    %v392 = vmax.f32 %v390, %v391
    %v393 = vrot.slane %v392, 2
    %v394 = vmax.f32 %v392, %v393
    %v395 = vrot.slane %v394, 1
    %v396 = vmax.f32 %v394, %v395
    %vm397 = vcmp.eq.s32.totalorder %v269, 6
    %vm398 = vcmp.eq.s32.totalorder %v270, 6
    %v399 = vsel %vm397, 1, 0
    %v400 = vsel %vm398, 1, 0
    %401 = vset.pattern.permute.xlu0 0
    %402 = vperm.xlu0 %401, %v399
    %v403 = vpop.permute.xlu0 %402
    %404 = vset.pattern.permute.xlu0 0
    %405 = vperm.xlu0 %404, %v400
    %v406 = vpop.permute.xlu0 %405
    %vm407 = vcmp.eq.s32.totalorder %v403, 1
    %vm408 = vcmp.eq.s32.totalorder %v406, 1
    %v409 = vsel %vm407, %v267, 0.0
    %v410 = vsel %vm408, %v268, 0.0
    %v411 = vmax.f32 %v409, %v410
    %v412 = vrot.slane %v411, 4
    %v413 = vmax.f32 %v411, %v412
    %v414 = vrot.slane %v413, 2
    %v415 = vmax.f32 %v413, %v414
    %v416 = vrot.slane %v415, 1
    %v417 = vmax.f32 %v415, %v416
    %vm418 = vcmp.eq.s32.totalorder %v269, 7
    %vm419 = vcmp.eq.s32.totalorder %v270, 7
    %v420 = vsel %vm418, 1, 0
    %v421 = vsel %vm419, 1, 0
    %422 = vset.pattern.permute.xlu0 0
    %423 = vperm.xlu0 %422, %v420
    %v424 = vpop.permute.xlu0 %423
    %425 = vset.pattern.permute.xlu0 0
    %426 = vperm.xlu0 %425, %v421
    %v427 = vpop.permute.xlu0 %426
    %vm428 = vcmp.eq.s32.totalorder %v424, 1
    %vm429 = vcmp.eq.s32.totalorder %v427, 1
    %v430 = vsel %vm428, %v267, 0.0
    %v431 = vsel %vm429, %v268, 0.0
    %v432 = vmax.f32 %v430, %v431
    %v433 = vrot.slane %v432, 4
    %v434 = vmax.f32 %v432, %v433
    %v435 = vrot.slane %v434, 2
    %v436 = vmax.f32 %v434, %v435
    %v437 = vrot.slane %v436, 1
    %v438 = vmax.f32 %v436, %v437
    %vm439 = vcmask 1040384
    %v440 = vsel %vm439, %v291, %v312
    %vm441 = vcmask 1041408
    %v442 = vsel %vm441, %v440, %v333
    %vm443 = vcmask 1042432
    %v444 = vsel %vm443, %v442, %v354
    %vm445 = vcmask 1043456
    %v446 = vsel %vm445, %v444, %v375
    %vm447 = vcmask 1044480
    %v448 = vsel %vm447, %v446, %v396
    %vm449 = vcmask 1045504
    %v450 = vsel %vm449, %v448, %v417
    %vm451 = vcmask 1046528
    %v452 = vsel %vm451, %v450, %v438
    %v453 = vld [vmem:[#allocation3] sm:$0xff]
    %v454 = vmax.f32 %v453, %v452
    %455 = vst [vmem:[#allocation3] sm:$0xff] %v454
    // Predicated region
    $region46: #{tpu_custom_call.1} parent=1 // pred_check
      %p456 = pneg %p68
    $region47: #{tpu_custom_call.1} parent=1 // pred_check_branch
      %458 = sbr.rel (%p456) target = $region49
    $region48: #{tpu_custom_call.1} parent=1 // pred_region
      %v459 = vld [vmem:[%s2] sm:$0xff]
      %v460 = vld [vmem:[#allocation7] sm:$0xff]
      %v461 = vld [vmem:[#allocation7 + $0x8] sm:$0xff]
      %v462 = vld [vmem:[#allocation7 + $0x10] sm:$0xff]
      %v463 = vld [vmem:[#allocation7 + $0x18] sm:$0xff]
      %v464 = vld [vmem:[#allocation7 + $0x20] sm:$0xff]
      %v465 = vld [vmem:[#allocation7 + $0x28] sm:$0xff]
      %v466 = vld [vmem:[#allocation7 + $0x30] sm:$0xff]
      %v467 = vld [vmem:[#allocation7 + $0x38] sm:$0xff]
      %v468 = vld [vmem:[#allocation7 + $0x40] sm:$0xff]
      %v469 = vld [vmem:[#allocation7 + $0x48] sm:$0xff]
      %v470 = vld [vmem:[#allocation7 + $0x50] sm:$0xff]
      %v471 = vld [vmem:[#allocation7 + $0x58] sm:$0xff]
      %v472 = vld [vmem:[#allocation7 + $0x60] sm:$0xff]
      %v473 = vld [vmem:[#allocation7 + $0x68] sm:$0xff]
      %v474 = vld [vmem:[#allocation7 + $0x70] sm:$0xff]
      %v475 = vld [vmem:[#allocation7 + $0x78] sm:$0xff]
      %v476 = vld [vmem:[#allocation3] sm:$0xff]
      %v477 = vld [vmem:[#allocation9] sm:$0xff]
      %v478 = vld [vmem:[#allocation9 + $0x8] sm:$0xff]
      %v479 = vld [vmem:[#allocation9 + $0x10] sm:$0xff]
      %v480 = vld [vmem:[#allocation9 + $0x18] sm:$0xff]
      %v481 = vld [vmem:[#allocation9 + $0x20] sm:$0xff]
      %v482 = vld [vmem:[#allocation9 + $0x28] sm:$0xff]
      %v483 = vld [vmem:[#allocation9 + $0x30] sm:$0xff]
      %v484 = vld [vmem:[#allocation9 + $0x38] sm:$0xff]
      %v485 = vld [vmem:[#allocation9 + $0x40] sm:$0xff]
      %v486 = vld [vmem:[#allocation9 + $0x48] sm:$0xff]
      %v487 = vld [vmem:[#allocation9 + $0x50] sm:$0xff]
      %v488 = vld [vmem:[#allocation9 + $0x58] sm:$0xff]
      %v489 = vld [vmem:[#allocation9 + $0x60] sm:$0xff]
      %v490 = vld [vmem:[#allocation9 + $0x68] sm:$0xff]
      %v491 = vld [vmem:[#allocation9 + $0x70] sm:$0xff]
      %v492 = vld [vmem:[#allocation9 + $0x78] sm:$0xff]
      %493 = vmatprep.subr.mxu0 0.0
      %494 = vmatpush1.msra.mxu0 %v477
      %495 = vmatprep.subr.mxu0 0.0
      %496 = vmatpush1.msra.mxu0 %v478
      %497 = vmatprep.subr.mxu0 0.0
      %498 = vmatpush1.msra.mxu0 %v479
      %499 = vmatprep.subr.mxu0 0.0
      %500 = vmatpush1.msra.mxu0 %v480
      %501 = vmatprep.subr.mxu0 0.0
      %502 = vmatpush1.msra.mxu0 %v481
      %503 = vmatprep.subr.mxu0 0.0
      %504 = vmatpush1.msra.mxu0 %v482
      %505 = vmatprep.subr.mxu0 0.0
      %506 = vmatpush1.msra.mxu0 %v483
      %507 = vmatprep.subr.mxu0 0.0
      %508 = vmatpush1.msra.mxu0 %v484
      %509 = vmatprep.subr.mxu0 0.0
      %510 = vmatpush1.msra.mxu0 %v485
      %511 = vmatprep.subr.mxu0 0.0
      %512 = vmatpush1.msra.mxu0 %v486
      %513 = vmatprep.subr.mxu0 0.0
      %514 = vmatpush1.msra.mxu0 %v487
      %515 = vmatprep.subr.mxu0 0.0
      %516 = vmatpush1.msra.mxu0 %v488
      %517 = vmatprep.subr.mxu0 0.0
      %518 = vmatpush1.msra.mxu0 %v489
      %519 = vmatprep.subr.mxu0 0.0
      %520 = vmatpush1.msra.mxu0 %v490
      %521 = vmatprep.subr.mxu0 0.0
      %522 = vmatpush1.msra.mxu0 %v491
      %523 = vmatprep.subr.mxu0 0.0
      %524 = vmatpush1.msra.mxu0 %v492
      %525 = vmatprep.subr.mxu0 0.0
      %526 = vmatpush1.msra.mxu0 0.0
      %527 = vmatprep.subr.mxu0 0.0
      %528 = vmatpush1.msra.mxu0 0.0
      %529 = vmatprep.subr.mxu0 0.0
      %530 = vmatpush1.msra.mxu0 0.0
      %531 = vmatprep.subr.mxu0 0.0
      %532 = vmatpush1.msra.mxu0 0.0
      %533 = vmatprep.subr.mxu0 0.0
      %534 = vmatpush1.msra.mxu0 0.0
      %535 = vmatprep.subr.mxu0 0.0
      %536 = vmatpush1.msra.mxu0 0.0
      %537 = vmatprep.subr.mxu0 0.0
      %538 = vmatpush1.msra.mxu0 0.0
      %539 = vmatprep.subr.mxu0 0.0
      %540 = vmatpush1.msra.mxu0 0.0
      %541 = vmatprep.subr.mxu0 0.0
      %542 = vmatpush1.msra.mxu0 0.0
      %543 = vmatprep.subr.mxu0 0.0
      %544 = vmatpush1.msra.mxu0 0.0
      %545 = vmatprep.subr.mxu0 0.0
      %546 = vmatpush1.msra.mxu0 0.0
      %547 = vmatprep.subr.mxu0 0.0
      %548 = vmatpush1.msra.mxu0 0.0
      %549 = vmatprep.subr.mxu0 0.0
      %550 = vmatpush1.msra.mxu0 0.0
      %551 = vmatprep.subr.mxu0 0.0
      %552 = vmatpush1.msra.mxu0 0.0
      %553 = vmatprep.subr.mxu0 0.0
      %554 = vmatpush1.msra.mxu0 0.0
      %555 = vmatprep.subr.mxu0 0.0
      %556 = vmatpush1.msra.mxu0 0.0
      %557 = vmatprep.mubr.f32.mxu0 0.0
      %558 = vmatmul.mubr.f32.gmra.mrb[0].mxu0 %v476
      %v559 = vpop.f32.mrb[0].mxu0
      %v560 = vadd.f32 0.0, %v559
      %v561 = vpop.f32.mrb[0].mxu0
      %562 = vdwg.mxu0
      %563 = vmatprep.subr.mxu0 0.0
      %564 = vmatpush1.msra.mxu0 %v460
      %565 = vmatprep.subr.mxu0 0.0
      %566 = vmatpush1.msra.mxu0 %v461
      %567 = vmatprep.subr.mxu0 0.0
      %568 = vmatpush1.msra.mxu0 %v462
      %569 = vmatprep.subr.mxu0 0.0
      %570 = vmatpush1.msra.mxu0 %v463
      %571 = vmatprep.subr.mxu0 0.0
      %572 = vmatpush1.msra.mxu0 %v464
      %573 = vmatprep.subr.mxu0 0.0
      %574 = vmatpush1.msra.mxu0 %v465
      %575 = vmatprep.subr.mxu0 0.0
      %576 = vmatpush1.msra.mxu0 %v466
      %577 = vmatprep.subr.mxu0 0.0
      %578 = vmatpush1.msra.mxu0 %v467
      %579 = vmatprep.subr.mxu0 0.0
      %580 = vmatpush1.msra.mxu0 %v468
      %581 = vmatprep.subr.mxu0 0.0
      %582 = vmatpush1.msra.mxu0 %v469
      %583 = vmatprep.subr.mxu0 0.0
      %584 = vmatpush1.msra.mxu0 %v470
      %585 = vmatprep.subr.mxu0 0.0
      %586 = vmatpush1.msra.mxu0 %v471
      %587 = vmatprep.subr.mxu0 0.0
      %588 = vmatpush1.msra.mxu0 %v472
      %589 = vmatprep.subr.mxu0 0.0
      %590 = vmatpush1.msra.mxu0 %v473
      %591 = vmatprep.subr.mxu0 0.0
      %592 = vmatpush1.msra.mxu0 %v474
      %593 = vmatprep.subr.mxu0 0.0
      %594 = vmatpush1.msra.mxu0 %v475
      %595 = vmatprep.subr.mxu0 0.0
      %596 = vmatpush1.msra.mxu0 0.0
      %597 = vmatprep.subr.mxu0 0.0
      %598 = vmatpush1.msra.mxu0 0.0
      %599 = vmatprep.subr.mxu0 0.0
      %600 = vmatpush1.msra.mxu0 0.0
      %601 = vmatprep.subr.mxu0 0.0
      %602 = vmatpush1.msra.mxu0 0.0
      %603 = vmatprep.subr.mxu0 0.0
      %604 = vmatpush1.msra.mxu0 0.0
      %605 = vmatprep.subr.mxu0 0.0
      %606 = vmatpush1.msra.mxu0 0.0
      %607 = vmatprep.subr.mxu0 0.0
      %608 = vmatpush1.msra.mxu0 0.0
      %609 = vmatprep.subr.mxu0 0.0
      %610 = vmatpush1.msra.mxu0 0.0
      %611 = vmatprep.subr.mxu0 0.0
      %612 = vmatpush1.msra.mxu0 0.0
      %613 = vmatprep.subr.mxu0 0.0
      %614 = vmatpush1.msra.mxu0 0.0
      %615 = vmatprep.subr.mxu0 0.0
      %616 = vmatpush1.msra.mxu0 0.0
      %617 = vmatprep.subr.mxu0 0.0
      %618 = vmatpush1.msra.mxu0 0.0
      %619 = vmatprep.subr.mxu0 0.0
      %620 = vmatpush1.msra.mxu0 0.0
      %621 = vmatprep.subr.mxu0 0.0
      %622 = vmatpush1.msra.mxu0 0.0
      %623 = vmatprep.subr.mxu0 0.0
      %624 = vmatpush1.msra.mxu0 0.0
      %625 = vmatprep.subr.mxu0 0.0
      %626 = vmatpush1.msra.mxu0 0.0
      %627 = vmatprep.mubr.f32.mxu0 0.0
      %628 = vmatmul.mubr.f32.gmra.mrb[0].mxu0 %v459
      %v629 = vpop.f32.mrb[0].mxu0
      %v630 = vadd.f32 %v560, %v629
      %v631 = vpop.f32.mrb[0].mxu0
      %632 = vdwg.mxu0
      %633 = vst [vmem:[#allocation10] sm:$0xff] %v630
    $region49: #{tpu_custom_call.1} parent=1 // pred_fallthru
      _
    // Predicated region
    $region50: #{tpu_custom_call.1} parent=1 // pred_check
      _
    $region51: #{tpu_custom_call.1} parent=1 // pred_check_branch
      %635 = sbr.rel (0) target = $region53
    $region52: #{tpu_custom_call.1} parent=1 // pred_region
      %s637 = ssub.s32 128, 128
      %638 = vsyncadd [#allocation6], %s637
      %s640 = sshll.u32 [#allocation10], 4
      %s641 = int_to_ptr.vmem [resolvable:$true] %s640
      %643 = dma.vmem_to_hbm [thread:$0]  %s641, 128, %s7, [#allocation6]
    $region53: #{tpu_custom_call.1} parent=1 // pred_fallthru
      _
    // Predicated region
    $region54: #{tpu_custom_call.1} parent=1 // pred_check
      _
    $region55: #{tpu_custom_call.1} parent=1 // pred_check_branch
      %645 = sbr.rel (0) target = $region57
    $region56: #{tpu_custom_call.1} parent=1 // pred_region
      %646 = dma.done [#allocation6], 128
    $region57: #{tpu_custom_call.1} parent=1 // pred_fallthru
      _
    %647 = vsyncpa [#allocation5], 1
    %648 = vsyncpa [#allocation8], 1
    %649 = vsyncpa [#allocation6], 1

</llo_original>
